<compile_context>
chip_gen: v6e
topology: v6e:2x2x1
jax: 0.10.0
libtpu: 0.0.40
codegen_flags: <defaults>
</compile_context>

<pallas_src>
import functools

import jax
import jax.numpy as jnp
from jax import lax
from jax.experimental import pallas as pl
from jax.experimental.pallas import tpu as pltpu

_LANES = 128


def _round_up(v, m):
    return -(-v // m) * m


# ---------------------------------------------------------------------------
# layout helper: (B, *feat) -> (B, NR, 128) with edge padding of the tail
# ---------------------------------------------------------------------------
def _padded_sample_view(x):
    B = x.shape[0]
    N = 1
    for d in x.shape[1:]:
        N *= d
    xf = x.reshape(B, N)
    NR = -(-N // _LANES)
    Np = NR * _LANES
    if Np != N:
        # edge padding keeps per-sample min/max unchanged; rare (awkward shapes)
        xf = jnp.pad(xf, ((0, 0), (0, Np - N)), mode="edge")
    return xf.reshape(B, NR, _LANES), N, NR


# ---------------------------------------------------------------------------
# Kernel 1: per-sample min / max.
# Grid = (B, feature_chunks); batch axis is "parallel" (v7x megacore),
# chunk axis is the resident-accumulator reduction.  Blocks are (1, tnr, 128)
# (sublane/lane dense); the per-sample accumulator is a (1, 1, 128) lane
# partial, folded to a scalar in the wrapper.
# ---------------------------------------------------------------------------
def _make_minmax_kernel(nr_total, tnr, needs_mask):
    def kernel(x_ref, min_ref, max_ref):
        j = pl.program_id(1)

        @pl.when(j == 0)
        def _():
            min_ref[...] = jnp.full(min_ref.shape, jnp.inf, jnp.float32)
            max_ref[...] = jnp.full(max_ref.shape, -jnp.inf, jnp.float32)

        x = x_ref[...]                              # (1, tnr, 128), native dtype
        if needs_mask:                              # static: only when tnr ∤ NR
            rows_left = nr_total - j * tnr
            ridx = lax.broadcasted_iota(jnp.int32, x.shape, 1)
            ok = ridx < rows_left
            x_min_src = jnp.where(ok, x, jnp.array(jnp.inf, x.dtype))
            x_max_src = jnp.where(ok, x, jnp.array(-jnp.inf, x.dtype))
        else:
            x_min_src = x_max_src = x

        blk_min = jnp.min(x_min_src, axis=1, keepdims=True).astype(jnp.float32)
        blk_max = jnp.max(x_max_src, axis=1, keepdims=True).astype(jnp.float32)
        min_ref[...] = jnp.minimum(min_ref[...], blk_min)
        max_ref[...] = jnp.maximum(max_ref[...], blk_max)

    return kernel


def _per_sample_minmax(x3, nr):
    """x3: (B, NR, 128).  Returns per-sample (min, max) as float32 (B,) arrays."""
    B = x3.shape[0]
    itemsize = x3.dtype.itemsize
    # ~2 MiB row-chunks (multiple of 8 sublanes), or the full sample if smaller
    max_rows = max(8, ((2 << 20) // (_LANES * itemsize)) // 8 * 8)
    tnr = nr if nr <= max_rows else max_rows
    nchunks = -(-nr // tnr)
    needs_mask = (nr % tnr) != 0

    pmin, pmax = pl.pallas_call(
        _make_minmax_kernel(nr, tnr, needs_mask),
        out_shape=(
            jax.ShapeDtypeStruct((B, 1, _LANES), jnp.float32),
            jax.ShapeDtypeStruct((B, 1, _LANES), jnp.float32),
        ),
        grid=(B, nchunks),
        in_specs=[pl.BlockSpec((1, tnr, _LANES), lambda b, j: (b, j, 0))],
        out_specs=(
            pl.BlockSpec((1, 1, _LANES), lambda b, j: (b, 0, 0)),
            pl.BlockSpec((1, 1, _LANES), lambda b, j: (b, 0, 0)),
        ),
        compiler_params=pltpu.CompilerParams(
            dimension_semantics=("parallel", "arbitrary"),
            vmem_limit_bytes=32 * 1024 * 1024,
        ),
    )(x3)

    mins = pmin.min(axis=(1, 2))    # (B,)
    maxs = pmax.max(axis=(1, 2))    # (B,)
    return mins, maxs


# ---------------------------------------------------------------------------
# Kernel 2: elementwise quantize-dequantize.  Scalars live in SMEM; x / noise
# / out are streamed in lane-dense (rows, 128) blocks of ~4 MiB.
# ---------------------------------------------------------------------------
def _make_quant_kernel(qmax, stochastic, out_dtype):
    if stochastic:
        def kernel(params_ref, x_ref, noise_ref, o_ref):
            inv_sc = params_ref[2]
            qb = params_ref[3]
            x = x_ref[...].astype(jnp.float32)
            q = x * inv_sc + qb + noise_ref[...]
            q = jnp.round(jnp.clip(q, 0.0, qmax))           # clamp then round
            o_ref[...] = (q * params_ref[1] + params_ref[0]).astype(out_dtype)
    else:
        def kernel(params_ref, x_ref, o_ref):
            inv_sc = params_ref[2]
            qb = params_ref[3]
            x = x_ref[...].astype(jnp.float32)
            q = x * inv_sc + qb
            q = jnp.round(jnp.clip(q, 0.0, qmax))
            o_ref[...] = (q * params_ref[1] + params_ref[0]).astype(out_dtype)
    return kernel


def _quantize_dequantize(x3, params, noise, *, qmax, stochastic, out_dtype):
    B, NR, _ = x3.shape
    rt = B * NR
    xq = x3.reshape(rt, _LANES)

    # ~4 MiB (f32-equivalent) row blocks; keep grid >= 2 so the "parallel"
    # axis can shard across v7x's two TensorCores.
    max_rows = max(8, ((4 << 20) // (_LANES * 4)) // 8 * 8)       # 8192 rows
    if rt <= 8:
        trq = rt
    else:
        nblocks = max(2, -(-rt // max_rows))
        trq = min(_round_up(-(-rt // nblocks), 8), max_rows)
    grid = (-(-rt // trq),)

    in_specs = [
        pl.BlockSpec(memory_space=pltpu.MemorySpace.SMEM),        # scalars
        pl.BlockSpec((trq, _LANES), lambda i: (i, 0)),            # x
    ]
    args = [params, xq]
    if stochastic:
        in_specs.append(pl.BlockSpec((trq, _LANES), lambda i: (i, 0)))
        args.append(noise)

    out = pl.pallas_call(
        _make_quant_kernel(float(qmax), stochastic, out_dtype),
        out_shape=jax.ShapeDtypeStruct((rt, _LANES), out_dtype),
        grid=grid,
        in_specs=in_specs,
        out_specs=pl.BlockSpec((trq, _LANES), lambda i: (i, 0)),
        compiler_params=pltpu.CompilerParams(
            dimension_semantics=("parallel",),
            vmem_limit_bytes=32 * 1024 * 1024,
        ),
    )(*args)
    return out.reshape(B, NR, _LANES)


# ---------------------------------------------------------------------------
# QuantMeasure forward (functional: running buffers are passed in / returned).
# ---------------------------------------------------------------------------
@functools.partial(
    jax.jit,
    static_argnames=("num_bits", "momentum", "training", "stochastic"))
def quant_measure_forward(x, running_min, running_max, key, *, num_bits=8,
                          momentum=0.1, training=True, stochastic=True):
    qmax = 2.0 ** num_bits - 1.0
    x3, n_valid, nr = _padded_sample_view(x)
    B = x3.shape[0]

    if training:
        mins, maxs = _per_sample_minmax(x3, nr)
        min_value = jnp.mean(mins)
        max_value = jnp.mean(maxs)
        new_rmin = running_min * momentum + min_value * (1.0 - momentum)
        new_rmax = running_max * momentum + max_value * (1.0 - momentum)
    else:
        min_value = jnp.reshape(running_min, ()).astype(jnp.float32)
        max_value = jnp.reshape(running_max, ()).astype(jnp.float32)
        new_rmin = running_min
        new_rmax = running_max

    scale = jnp.maximum((max_value - min_value) / qmax, 1e-8)
    inv_scale = 1.0 / scale
    qbias = -min_value * inv_scale                  # folded (x - min) * inv
    params = jnp.stack([min_value, scale, inv_scale, qbias]).astype(jnp.float32)

    noise = None
    if stochastic:
        noise = jax.random.uniform(key, (B * nr, _LANES), jnp.float32,
                                   minval=-0.5, maxval=0.5)

    out3 = _quantize_dequantize(x3, params, noise, qmax=qmax,
                                stochastic=stochastic, out_dtype=x.dtype)

    Np = nr * _LANES
    out_flat = out3.reshape(B, Np)
    if Np != n_valid:
        out_flat = out_flat[:, :n_valid]
    out = out_flat.reshape(x.shape)
    return out, new_rmin, new_rmax


if __name__ == "__main__":
    key = jax.random.PRNGKey(0)
    key_x, key_noise = jax.random.split(key)

    # NCHW input, small shapes: batch=2, channels=4, spatial=16x16
    x = jax.random.normal(key_x, (2, 4, 16, 16), dtype=jnp.float32)
    running_min = jnp.zeros((), jnp.float32)      # buffer: torch.zeros(1)
    running_max = jnp.zeros((), jnp.float32)

    out, new_rmin, new_rmax = quant_measure_forward(
        x, running_min, running_max, key_noise,
        num_bits=8, momentum=0.1, training=True, stochastic=True)
    out_det, _, _ = quant_measure_forward(
        x, running_min, running_max, key_noise,
        num_bits=8, momentum=0.1, training=True, stochastic=False)
    out_eval, _, _ = quant_measure_forward(
        x, new_rmin, new_rmax, key_noise,
        num_bits=8, momentum=0.1, training=False, stochastic=True)
    jax.block_until_ready((out, out_det, out_eval, new_rmin, new_rmax))

    # ------------------------------------------------------------------
    # pure-JAX reference of the deterministic parts of the forward
    # ------------------------------------------------------------------
    B = x.shape[0]
    xf = x.reshape(B, -1).astype(jnp.float32)
    min_value = xf.min(axis=1).mean()
    max_value = xf.max(axis=1).mean()
    qmax = 255.0
    scale = jnp.maximum((max_value - min_value) / qmax, 1e-8)
    inv_scale = 1.0 / scale
    ref_rmin = running_min * 0.1 + min_value * 0.9
    ref_rmax = running_max * 0.1 + max_value * 0.9
    q_ref = jnp.round(jnp.clip((xf - min_value) / scale, 0.0, qmax))
    ref_det = (q_ref * scale + min_value).reshape(x.shape)

    # statistics + EMA must match exactly
    assert jnp.allclose(new_rmin, ref_rmin, atol=1e-6), "running_min mismatch"
    assert jnp.allclose(new_rmax, ref_rmax, atol=1e-6), "running_max mismatch"

    # deterministic path: almost all elements bit-match the torch formula;
    # any residual (half-level rounding at 1-ulp boundaries) stays <= 1 level
    diff_det = jnp.abs(out_det - ref_det)
    frac_match = float(jnp.mean((diff_det <= 1e-4).astype(jnp.float32)))
    assert frac_match > 0.995, f"det output mismatch (match frac={frac_match})"
    assert float(jnp.max(diff_det)) <= float(scale) * 1.001, "det output off by >1 level"

    # stochastic path: on the quantization grid, in range, and within one
    # quantization level of the noiseless kernel result (noise in [-0.5, 0.5)).
    levels = (out.reshape(B, -1) - min_value) * inv_scale
    assert float(jnp.max(jnp.abs(levels - jnp.round(levels)))) < 1e-2, "off-grid output"
    assert bool(jnp.all(levels > -1e-2)) and bool(jnp.all(levels < qmax + 1e-2)), "out of range"
    assert float(jnp.max(jnp.abs(out - out_det))) <= float(scale) * 1.001, \
        "noise moved output by more than one level"

    # eval path smoke test (uses running buffers, still stochastic per spec)
    assert out_eval.shape == x.shape and bool(jnp.all(jnp.isfinite(out_eval))), "eval path failed"

    print("KERNEL_OK")
</pallas_src>

<mosaic_0001>
module attributes {stable_mosaic.version = 11 : i64} {
  func.func @kernel(%arg0: i32, %arg1: i32, %arg2: memref<1x8x128xf32, #tpu.memory_space<vmem>>, %arg3: memref<1x1x128xf32, #tpu.memory_space<vmem>>, %arg4: memref<1x1x128xf32, #tpu.memory_space<vmem>>) attributes {dimension_semantics = [#tpu.dimension_semantics<parallel>, #tpu.dimension_semantics<arbitrary>], iteration_bounds = array<i64: 2, 1>, scalar_prefetch = 0 : i64, scratch_operands = 0 : i64, tpu.core_type = #tpu.core_type<tc>, window_params = [{transform_indices = @transform_0, window_bounds = array<i64: 1, 8, 128>}, {transform_indices = @transform_1, window_bounds = array<i64: 1, 1, 128>}, {transform_indices = @transform_2, window_bounds = array<i64: 1, 1, 128>}]} {
    %c0_i32 = arith.constant 0 : i32
    %0 = arith.cmpi eq, %arg1, %c0_i32 : i32
    %1 = arith.extui %0 : i1 to i32
    %c0_i32_0 = arith.constant 0 : i32
    %2 = arith.cmpi ne, %1, %c0_i32_0 : i32
    scf.if %2 {
      %cst_16 = arith.constant 0x7F800000 : f32
      %14 = vector.broadcast %cst_16 : f32 to vector<1x1x128xf32>
      %c0_17 = arith.constant 0 : index
      %c0_18 = arith.constant 0 : index
      %c0_19 = arith.constant 0 : index
      %15 = vector.load %arg3[%c0_17, %c0_18, %c0_19] : memref<1x1x128xf32, #tpu.memory_space<vmem>>, vector<1x1x128xf32>
      tpu.vector_store %arg3[%c0_17, %c0_18, %c0_19], %14 {strides = array<i32>} : memref<1x1x128xf32, #tpu.memory_space<vmem>>, vector<1x1x128xf32>,
      %cst_20 = arith.constant 0xFF800000 : f32
      %16 = vector.broadcast %cst_20 : f32 to vector<1x1x128xf32>
      %c0_21 = arith.constant 0 : index
      %c0_22 = arith.constant 0 : index
      %c0_23 = arith.constant 0 : index
      %17 = vector.load %arg4[%c0_21, %c0_22, %c0_23] : memref<1x1x128xf32, #tpu.memory_space<vmem>>, vector<1x1x128xf32>
      tpu.vector_store %arg4[%c0_21, %c0_22, %c0_23], %16 {strides = array<i32>} : memref<1x1x128xf32, #tpu.memory_space<vmem>>, vector<1x1x128xf32>,
    } else {
    }
    %c0 = arith.constant 0 : index
    %c0_1 = arith.constant 0 : index
    %c0_2 = arith.constant 0 : index
    %3 = vector.load %arg2[%c0, %c0_1, %c0_2] : memref<1x8x128xf32, #tpu.memory_space<vmem>>, vector<1x8x128xf32>
    %cst = arith.constant dense<0x7F800000> : vector<1x128xf32>
    %4 = vector.multi_reduction <minimumf>, %3, %cst [1] : vector<1x8x128xf32> to vector<1x128xf32>
    %5 = vector.shape_cast %4 : vector<1x128xf32> to vector<1x1x128xf32>
    %cst_3 = arith.constant dense<0xFF800000> : vector<1x128xf32>
    %6 = vector.multi_reduction <maximumf>, %3, %cst_3 [1] : vector<1x8x128xf32> to vector<1x128xf32>
    %7 = vector.shape_cast %6 : vector<1x128xf32> to vector<1x1x128xf32>
    %c0_4 = arith.constant 0 : index
    %c0_5 = arith.constant 0 : index
    %c0_6 = arith.constant 0 : index
    %8 = vector.load %arg3[%c0_4, %c0_5, %c0_6] : memref<1x1x128xf32, #tpu.memory_space<vmem>>, vector<1x1x128xf32>
    %9 = arith.minimumf %8, %5 : vector<1x1x128xf32>
    %c0_7 = arith.constant 0 : index
    %c0_8 = arith.constant 0 : index
    %c0_9 = arith.constant 0 : index
    %10 = vector.load %arg3[%c0_7, %c0_8, %c0_9] : memref<1x1x128xf32, #tpu.memory_space<vmem>>, vector<1x1x128xf32>
    tpu.vector_store %arg3[%c0_7, %c0_8, %c0_9], %9 {strides = array<i32>} : memref<1x1x128xf32, #tpu.memory_space<vmem>>, vector<1x1x128xf32>,
    %c0_10 = arith.constant 0 : index
    %c0_11 = arith.constant 0 : index
    %c0_12 = arith.constant 0 : index
    %11 = vector.load %arg4[%c0_10, %c0_11, %c0_12] : memref<1x1x128xf32, #tpu.memory_space<vmem>>, vector<1x1x128xf32>
    %12 = arith.maximumf %11, %7 : vector<1x1x128xf32>
    %c0_13 = arith.constant 0 : index
    %c0_14 = arith.constant 0 : index
    %c0_15 = arith.constant 0 : index
    %13 = vector.load %arg4[%c0_13, %c0_14, %c0_15] : memref<1x1x128xf32, #tpu.memory_space<vmem>>, vector<1x1x128xf32>
    tpu.vector_store %arg4[%c0_13, %c0_14, %c0_15], %12 {strides = array<i32>} : memref<1x1x128xf32, #tpu.memory_space<vmem>>, vector<1x1x128xf32>,
    return
  }
  func.func @transform_0(%arg0: i32, %arg1: i32) -> (i32, i32, i32) {
    %c0_i32 = arith.constant 0 : i32
    %c0_i32_0 = arith.constant 0 : i32
    return %arg0, %arg1, %c0_i32 : i32, i32, i32
  }
  func.func @transform_1(%arg0: i32, %arg1: i32) -> (i32, i32, i32) {
    %c0_i32 = arith.constant 0 : i32
    %c0_i32_0 = arith.constant 0 : i32
    %c0_i32_1 = arith.constant 0 : i32
    return %arg0, %c0_i32, %c0_i32_0 : i32, i32, i32
  }
  func.func @transform_2(%arg0: i32, %arg1: i32) -> (i32, i32, i32) {
    %c0_i32 = arith.constant 0 : i32
    %c0_i32_0 = arith.constant 0 : i32
    %c0_i32_1 = arith.constant 0 : i32
    return %arg0, %c0_i32, %c0_i32_0 : i32, i32, i32
  }
}

module attributes {stable_mosaic.version = 11 : i64} {
  func.func @kernel(%arg0: i32, %arg1: memref<4xf32, #tpu.memory_space<smem>>, %arg2: memref<8x128xf32, #tpu.memory_space<vmem>>, %arg3: memref<8x128xf32, #tpu.memory_space<vmem>>, %arg4: memref<8x128xf32, #tpu.memory_space<vmem>>) attributes {dimension_semantics = [#tpu.dimension_semantics<parallel>], iteration_bounds = array<i64: 2>, scalar_prefetch = 0 : i64, scratch_operands = 0 : i64, tpu.core_type = #tpu.core_type<tc>, window_params = [{transform_indices = @transform_0, window_bounds = array<i64: 4>}, {transform_indices = @transform_1, window_bounds = array<i64: 8, 128>}, {transform_indices = @transform_2, window_bounds = array<i64: 8, 128>}, {transform_indices = @transform_3, window_bounds = array<i64: 8, 128>}]} {
    %c2 = arith.constant 2 : index
    %0 = memref.load %arg1[%c2] : memref<4xf32, #tpu.memory_space<smem>>
    %c3 = arith.constant 3 : index
    %1 = memref.load %arg1[%c3] : memref<4xf32, #tpu.memory_space<smem>>
    %c0 = arith.constant 0 : index
    %c0_0 = arith.constant 0 : index
    %2 = vector.load %arg2[%c0, %c0_0] : memref<8x128xf32, #tpu.memory_space<vmem>>, vector<8x128xf32>
    %3 = vector.broadcast %0 : f32 to vector<8x128xf32>
    %4 = arith.mulf %2, %3 : vector<8x128xf32>
    %5 = vector.broadcast %1 : f32 to vector<8x128xf32>
    %6 = arith.addf %4, %5 : vector<8x128xf32>
    %c0_1 = arith.constant 0 : index
    %c0_2 = arith.constant 0 : index
    %7 = vector.load %arg3[%c0_1, %c0_2] : memref<8x128xf32, #tpu.memory_space<vmem>>, vector<8x128xf32>
    %8 = arith.addf %6, %7 : vector<8x128xf32>
    %cst = arith.constant 0.000000e+00 : f32
    %cst_3 = arith.constant 2.550000e+02 : f32
    %9 = vector.broadcast %cst : f32 to vector<8x128xf32>
    %10 = arith.maximumf %9, %8 : vector<8x128xf32>
    %11 = vector.broadcast %cst_3 : f32 to vector<8x128xf32>
    %12 = arith.minimumf %11, %10 : vector<8x128xf32>
    %13 = math.roundeven %12 : vector<8x128xf32>
    %c1 = arith.constant 1 : index
    %14 = memref.load %arg1[%c1] : memref<4xf32, #tpu.memory_space<smem>>
    %15 = vector.broadcast %14 : f32 to vector<8x128xf32>
    %16 = arith.mulf %13, %15 : vector<8x128xf32>
    %c0_4 = arith.constant 0 : index
    %17 = memref.load %arg1[%c0_4] : memref<4xf32, #tpu.memory_space<smem>>
    %18 = vector.broadcast %17 : f32 to vector<8x128xf32>
    %19 = arith.addf %16, %18 : vector<8x128xf32>
    %c0_5 = arith.constant 0 : index
    %c0_6 = arith.constant 0 : index
    %20 = vector.load %arg4[%c0_5, %c0_6] : memref<8x128xf32, #tpu.memory_space<vmem>>, vector<8x128xf32>
    tpu.vector_store %arg4[%c0_5, %c0_6], %19 {strides = array<i32>} : memref<8x128xf32, #tpu.memory_space<vmem>>, vector<8x128xf32>,
    return
  }
  func.func @transform_0(%arg0: i32) -> i32 {
    %c0_i32 = arith.constant 0 : i32
    %c0_i32_0 = arith.constant 0 : i32
    return %c0_i32 : i32
  }
  func.func @transform_1(%arg0: i32) -> (i32, i32) {
    %c0_i32 = arith.constant 0 : i32
    %c0_i32_0 = arith.constant 0 : i32
    return %arg0, %c0_i32 : i32, i32
  }
  func.func @transform_2(%arg0: i32) -> (i32, i32) {
    %c0_i32 = arith.constant 0 : i32
    %c0_i32_0 = arith.constant 0 : i32
    return %arg0, %c0_i32 : i32, i32
  }
  func.func @transform_3(%arg0: i32) -> (i32, i32) {
    %c0_i32 = arith.constant 0 : i32
    %c0_i32_0 = arith.constant 0 : i32
    return %arg0, %c0_i32 : i32, i32
  }
}

</mosaic_0001>

<llo_original>
// kernel: quant_measure_forward.2
$region0: #{quant_measure_forward.2}
  #allocation0 [shape = 'u32[]', space=smem, size = 0x4, offset = 0x4, fixed_abs, tag = 'smem constant byte address 0x4 - core index']
  #allocation1 [shape = 'u32[144,128]{1,0:T(1,128)}', space=vmem, size = 0x12000, scoped, tag = 'internal scratch']
  %s0 = inlined_call_operand.vmem [shape: f32[2,8,128], index: 0, kind: input, shape index: {}]
  %s1 = inlined_call_operand.vmem [shape: f32[2,1,128], index: 1, kind: output, shape index: {0}]
  %s2 = inlined_call_operand.vmem [shape: f32[2,1,128], index: 2, kind: output, shape index: {1}]
  %3 = xla_tuple %s1, %s2
  %s4 = sld [smem:[#allocation0]]
  $region49: #{quant_measure_forward.2} parent=0
    _
  %s6 = ssub.s32 1, %s4
  %s7 = scalar_select 0, %s6, %s4
  loop: start=0, step=1, limit=4
  $region2: #{quant_measure_forward.2} parent=0 // loop_pre_header
    _
  $region3: #{quant_measure_forward.2} parent=0 // loop_header
    %s9 = sphi 0, %s13
    %p10 = scmp.ge.s32.totalorder %s9, 4
    %s16 = sphi 0, %s28
    %s17 = sphi 0, %s24
    %s18 = sphi 0, %s16
    %s19 = sphi 0, %s17
    %s20 = sphi 0, %s18
    %s21 = sphi 0, %s19
    %s33 = sphi 0, %s35
    %s36 = sphi 0, %s33
    %s37 = sphi 0, %s36
    %s53 = sphi 0, %s37
    %s59 = sphi 0, %s61
    %s62 = sphi 0, %s59
    %s63 = sphi 0, %s62
    %s79 = sphi 0, %s63
    %s85 = sphi 0, %s87
    %s88 = sphi 0, %s85
    %s89 = sphi 0, %s88
    %s105 = sphi 0, %s89
  $region4: #{quant_measure_forward.2} parent=0 // loop_header_branch
    %12 = sbr.rel (%p10) target = $region8
  $region5: #{quant_measure_forward.2} parent=0 // loop_body
    %s14 = ssub.s32 %s9, 1
    %s15 = ssub.s32 %s9, 2
    %s22 = sadd.s32 1, %s17
    %p23 = scmp.ge.s32.totalorder %s22, 1
    %s24 = scalar_select %p23, 0, %s22
    %s25 = sadd.s32 1, %s16
    %s26 = scalar_select %p23, %s25, %s16
    %p27 = scmp.ge.s32.totalorder %s26, 2
    %s28 = scalar_select %p27, 0, %s26
    %s29 = ssub.s32 %s16, %s28
    %s30 = ssub.s32 %s17, %s24
    %s31 = sor.u32 %s29, %s30
    %p32 = scmp.eq.s32.totalorder %s31, 0
    %s34 = sadd.s32 %s33, 1
    %s35 = scalar_select %p32, %s33, %s34
    %p38 = pneg %p32
    %p39 = scmp.eq.s32.totalorder %s9, 1
    %p40 = por %p38, %p39
    %p41 = scmp.ne.s32.totalorder %s33, %s36
    %p42 = scmp.eq.s32.totalorder %s9, 0
    %p43 = por %p41, %p42
    %p44 = scmp.ne.s32.totalorder %s33, %s36
    %p45 = scmp.eq.s32.totalorder %s14, 1
    %p46 = por %p44, %p45
    %p47 = scmp.ne.s32.totalorder %s36, %s37
    %p48 = scmp.eq.s32.totalorder %s14, 0
    %p49 = por %p47, %p48
    %p50 = scmp.ne.s32.totalorder %s36, %s37
    %p51 = scmp.eq.s32.totalorder %s15, 1
    %p52 = por %p50, %p51
    %p54 = scmp.ne.s32.totalorder %s37, %s53
    %p55 = scmp.eq.s32.totalorder %s15, 0
    %p56 = por %p54, %p55
    %s57 = ssub.s32 %s16, %s28
    %p58 = scmp.eq.s32.totalorder %s57, 0
    %s60 = sadd.s32 %s59, 1
    %s61 = scalar_select %p58, %s59, %s60
    %p64 = pneg %p58
    %p65 = scmp.eq.s32.totalorder %s9, 1
    %p66 = por %p64, %p65
    %p67 = scmp.ne.s32.totalorder %s59, %s62
    %p68 = scmp.eq.s32.totalorder %s9, 0
    %p69 = por %p67, %p68
    %p70 = scmp.ne.s32.totalorder %s59, %s62
    %p71 = scmp.eq.s32.totalorder %s14, 1
    %p72 = por %p70, %p71
    %p73 = scmp.ne.s32.totalorder %s62, %s63
    %p74 = scmp.eq.s32.totalorder %s14, 0
    %p75 = por %p73, %p74
    %p76 = scmp.ne.s32.totalorder %s62, %s63
    %p77 = scmp.eq.s32.totalorder %s15, 1
    %p78 = por %p76, %p77
    %p80 = scmp.ne.s32.totalorder %s63, %s79
    %p81 = scmp.eq.s32.totalorder %s15, 0
    %p82 = por %p80, %p81
    %s83 = ssub.s32 %s16, %s28
    %p84 = scmp.eq.s32.totalorder %s83, 0
    %s86 = sadd.s32 %s85, 1
    %s87 = scalar_select %p84, %s85, %s86
    %p90 = pneg %p84
    %p91 = scmp.eq.s32.totalorder %s9, 1
    %p92 = por %p90, %p91
    %p93 = scmp.ne.s32.totalorder %s85, %s88
    %p94 = scmp.eq.s32.totalorder %s9, 0
    %p95 = por %p93, %p94
    %p96 = scmp.ne.s32.totalorder %s85, %s88
    %p97 = scmp.eq.s32.totalorder %s14, 1
    %p98 = por %p96, %p97
    %p99 = scmp.ne.s32.totalorder %s88, %s89
    %p100 = scmp.eq.s32.totalorder %s14, 0
    %p101 = por %p99, %p100
    %p102 = scmp.ne.s32.totalorder %s88, %s89
    %p103 = scmp.eq.s32.totalorder %s15, 1
    %p104 = por %p102, %p103
    %p106 = scmp.ne.s32.totalorder %s89, %s105
    %p107 = scmp.eq.s32.totalorder %s15, 0
    %p108 = por %p106, %p107
    %p109 = scmp.le.s32.totalorder 1, %s9
    %p110 = scmp.lt.s32.totalorder %s9, 3
    %p111 = pnand %p109, %p110
    %p112 = pneg %p111
    // Predicated region
    $region9: #{quant_measure_forward.2} parent=5 // pred_check
      _
    $region10: #{quant_measure_forward.2} parent=5 // pred_check_branch
      %114 = sbr.rel (%p111) target = $region12
    $region11: #{quant_measure_forward.2} parent=5 // pred_region
      %s115 = ssub.s32 %s9, 1
    $region12: #{quant_measure_forward.2} parent=5 // pred_fallthru
      _
    %p116 = scmp.lt.s32.totalorder %s9, 2
    // Predicated region
    $region13: #{quant_measure_forward.2} parent=5 // pred_check
      %p117 = pneg %p116
    $region14: #{quant_measure_forward.2} parent=5 // pred_check_branch
      %119 = sbr.rel (%p117) target = $region16
    $region15: #{quant_measure_forward.2} parent=5 // pred_region
      // Predicated region
      $region17: #{quant_measure_forward.2} parent=15 // pred_check
        %p120 = pneg %p43
      $region18: #{quant_measure_forward.2} parent=15 // pred_check_branch
        %122 = sbr.rel (%p120) target = $region20
      $region19: #{quant_measure_forward.2} parent=15 // pred_region
        %p123 = scmp.lt.s32.totalorder %s16, 1
        %s124 = scalar_select %p123, %s16, 1
        %p125 = scmp.lt.s32.totalorder %s17, 0
        %s126 = scalar_select %p125, %s17, 0
        %s127 = sadd.s32 %s126, %s124
        %s128 = smul.addr %s127, 8
        %s129 = scalar_lea.vmem %s0, %s128
      $region20: #{quant_measure_forward.2} parent=15 // pred_fallthru
        _
    $region16: #{quant_measure_forward.2} parent=5 // pred_fallthru
      _
    %p130 = scmp.le.s32.totalorder 1, %s9
    %p131 = scmp.lt.s32.totalorder %s9, 3
    %p132 = pnand %p130, %p131
    %p133 = pneg %p132
    // Predicated region
    $region21: #{quant_measure_forward.2} parent=5 // pred_check
      _
    $region22: #{quant_measure_forward.2} parent=5 // pred_check_branch
      %135 = sbr.rel (%p132) target = $region24
    $region23: #{quant_measure_forward.2} parent=5 // pred_region
      %s136 = ssub.s32 %s9, 1
      %p137 = scmp.lt.s32.totalorder %s18, 1
      %s138 = scalar_select %p137, %s18, 1
      %p139 = scmp.lt.s32.totalorder %s19, 0
      %s140 = scalar_select %p139, %s19, 0
      %s141 = sadd.s32 %s140, %s138
      %s142 = smul.addr %s141, 8
      %s143 = scalar_lea.vmem %s0, %s142
      %p144 = pneg %p49
      %p145 = pneg %p46
      %p146 = pneg %p75
      %p147 = pneg %p72
      %p148 = scmp.lt.s32.totalorder %s18, 1
      %s149 = scalar_select %p148, %s18, 1
      %s150 = scalar_lea.vmem %s1, %s149
      %p151 = pneg %p101
      %p152 = pneg %p98
      %p153 = scmp.lt.s32.totalorder %s18, 1
      %s154 = scalar_select %p153, %s18, 1
      %s155 = scalar_lea.vmem %s2, %s154
      %p156 = scmp.lt.s32.totalorder %s18, 1
      %s157 = scalar_select %p156, %s18, 1
      %p158 = scmp.lt.s32.totalorder %s19, 0
      %s159 = scalar_select %p158, %s19, 0
      %s160 = sadd.s32 %s159, %s157
      %s161 = smul.addr %s160, 8
      %s162 = scalar_lea.vmem %s0, %s161
      %p163 = scmp.lt.s32.totalorder %s18, 1
      %s164 = scalar_select %p163, %s18, 1
      %s165 = scalar_lea.vmem %s1, %s164
      %p166 = scmp.lt.s32.totalorder %s18, 1
      %s167 = scalar_select %p166, %s18, 1
      %s168 = scalar_lea.vmem %s2, %s167
      %p169 = scmp.eq.s32.totalorder %s19, 0
      // Predicated region
      $region25: #{quant_measure_forward.2} parent=23 // pred_check
        %p170 = pneg %p169
      $region26: #{quant_measure_forward.2} parent=23 // pred_check_branch
        %172 = sbr.rel (%p170) target = $region28
      $region27: #{quant_measure_forward.2} parent=23 // pred_region
        %173 = vst [vmem:[%s165] sm:$0x1] inf
        %174 = vst [vmem:[%s168] sm:$0x1] -inf
      $region28: #{quant_measure_forward.2} parent=23 // pred_fallthru
        _
      %v175 = vld [vmem:[%s162] sm:$0xff]
      %v176 = vrot.slane %v175, 4
      %v177 = vmin.f32 %v175, %v176
      %v178 = vrot.slane %v177, 2
      %v179 = vmin.f32 %v177, %v178
      %v180 = vrot.slane %v179, 1
      %v181 = vmin.f32 %v179, %v180
      %v182 = vrot.slane %v175, 4
      %v183 = vmax.f32 %v175, %v182
      %v184 = vrot.slane %v183, 2
      %v185 = vmax.f32 %v183, %v184
      %v186 = vrot.slane %v185, 1
      %v187 = vmax.f32 %v185, %v186
      %v188 = vld [vmem:[%s165] sm:$0x1]
      %v189 = vmin.f32 %v188, %v181
      %190 = vst [vmem:[%s165] sm:$0x1] %v189
      %v191 = vld [vmem:[%s168] sm:$0x1]
      %v192 = vmax.f32 %v191, %v187
      %193 = vst [vmem:[%s168] sm:$0x1] %v192
      %p194 = scmp.lt.s32.totalorder %s18, 1
      %s195 = scalar_select %p194, %s18, 1
      %s196 = scalar_lea.vmem %s1, %s195
      %p197 = scmp.lt.s32.totalorder %s18, 1
      %s198 = scalar_select %p197, %s18, 1
      %s199 = scalar_lea.vmem %s2, %s198
      // Predicated region
      $region29: #{quant_measure_forward.2} parent=23 // pred_check
        %p200 = pneg %p72
      $region30: #{quant_measure_forward.2} parent=23 // pred_check_branch
        %202 = sbr.rel (%p200) target = $region32
      $region31: #{quant_measure_forward.2} parent=23 // pred_region
        _
      $region32: #{quant_measure_forward.2} parent=23 // pred_fallthru
        _
      // Predicated region
      $region33: #{quant_measure_forward.2} parent=23 // pred_check
        %p203 = pneg %p98
      $region34: #{quant_measure_forward.2} parent=23 // pred_check_branch
        %205 = sbr.rel (%p203) target = $region36
      $region35: #{quant_measure_forward.2} parent=23 // pred_region
        _
      $region36: #{quant_measure_forward.2} parent=23 // pred_fallthru
        _
    $region24: #{quant_measure_forward.2} parent=5 // pred_fallthru
      _
    %p206 = scmp.le.s32.totalorder 2, %s9
    // Predicated region
    $region37: #{quant_measure_forward.2} parent=5 // pred_check
      %p207 = pneg %p206
    $region38: #{quant_measure_forward.2} parent=5 // pred_check_branch
      %209 = sbr.rel (%p207) target = $region40
    $region39: #{quant_measure_forward.2} parent=5 // pred_region
      %s210 = ssub.s32 %s9, 2
      // Predicated region
      $region41: #{quant_measure_forward.2} parent=39 // pred_check
        %p211 = pneg %p78
      $region42: #{quant_measure_forward.2} parent=39 // pred_check_branch
        %213 = sbr.rel (%p211) target = $region44
      $region43: #{quant_measure_forward.2} parent=39 // pred_region
        %p214 = scmp.lt.s32.totalorder %s20, 1
        %s215 = scalar_select %p214, %s20, 1
        %s216 = scalar_lea.vmem %s1, %s215
      $region44: #{quant_measure_forward.2} parent=39 // pred_fallthru
        _
      // Predicated region
      $region45: #{quant_measure_forward.2} parent=39 // pred_check
        %p217 = pneg %p104
      $region46: #{quant_measure_forward.2} parent=39 // pred_check_branch
        %219 = sbr.rel (%p217) target = $region48
      $region47: #{quant_measure_forward.2} parent=39 // pred_region
        %p220 = scmp.lt.s32.totalorder %s20, 1
        %s221 = scalar_select %p220, %s20, 1
        %s222 = scalar_lea.vmem %s2, %s221
      $region48: #{quant_measure_forward.2} parent=39 // pred_fallthru
        _
    $region40: #{quant_measure_forward.2} parent=5 // pred_fallthru
      _
  $region6: #{quant_measure_forward.2} parent=0 // loop_footer
    %s13 = sadd.s32 1, %s9
  $region7: #{quant_measure_forward.2} parent=0 // loop_footer_branch
    %8 = sbr.rel target = $region3
  $region8: #{quant_measure_forward.2} parent=0 // loop_exit
    _

// kernel: quant_measure_forward.3
$region0: #{quant_measure_forward.3}
  #allocation0 [shape = 'u32[]', space=smem, size = 0x4, offset = 0x4, fixed_abs, tag = 'smem constant byte address 0x4 - core index']
  #allocation1 [shape = 'u32[144,128]{1,0:T(1,128)}', space=vmem, size = 0x12000, scoped, tag = 'internal scratch']
  %s0 = inlined_call_operand.vmem [shape: f32[4], index: 0, kind: input, shape index: {}]
  %s1 = inlined_call_operand.vmem [shape: f32[16,128], index: 1, kind: input, shape index: {}]
  %s2 = inlined_call_operand.vmem [shape: f32[16,128], index: 2, kind: input, shape index: {}]
  %s3 = inlined_call_operand.vmem [shape: f32[16,128], index: 3, kind: output, shape index: {}]
  %s4 = sld [smem:[#allocation0]]
  $region49: #{quant_measure_forward.3} parent=0
    _
  %s6 = ssub.s32 1, %s4
  %s7 = scalar_select 0, %s6, %s4
  $region1: #{quant_measure_forward.3} parent=0
    #allocation2 [shape = 'u8[512]{0}', space=smem, size = 0x200, scoped, tag = 'input window, operand 0, single buffered']
    #allocation3 [shape = 's32[2]{0}', space=sflag, size = 0x8, scoped, tag = 'scoped memory for quant_measure_forward.3']
    %8 = vsyncpa [#allocation3], 0
    loop: start=0, step=1, limit=4
    $region2: #{quant_measure_forward.3} parent=1 // loop_pre_header
      _
    $region3: #{quant_measure_forward.3} parent=1 // loop_header
      %s10 = sphi 0, %s14
      %p11 = scmp.ge.s32.totalorder %s10, 4
      %s18 = sphi 0, %s18
      %s20 = sphi 0, %s18
      %s21 = sphi 0, %s20
      %s35 = sphi 0, %s21
      %s41 = sphi 0, %s43
      %s44 = sphi 0, %s41
      %s45 = sphi 0, %s44
      %s61 = sphi 0, %s45
      %s67 = sphi 0, %s69
      %s70 = sphi 0, %s67
      %s71 = sphi 0, %s70
      %s87 = sphi 0, %s71
      %s93 = sphi 0, %s95
      %s96 = sphi 0, %s93
      %s97 = sphi 0, %s96
      %s113 = sphi 0, %s97
    $region4: #{quant_measure_forward.3} parent=1 // loop_header_branch
      %13 = sbr.rel (%p11) target = $region8
    $region5: #{quant_measure_forward.3} parent=1 // loop_body
      %s15 = ssub.s32 %s10, 1
      %s16 = ssub.s32 %s10, 2
      %s17 = sadd.s32 %s10, 1
      %s19 = sadd.s32 %s18, 1
      %p22 = scmp.eq.s32.totalorder %s10, 1
      %p23 = scmp.ne.s32.totalorder %s18, %s20
      %p24 = scmp.eq.s32.totalorder %s10, 0
      %p25 = por %p23, %p24
      %p26 = scmp.ne.s32.totalorder %s18, %s20
      %p27 = scmp.eq.s32.totalorder %s15, 1
      %p28 = por %p26, %p27
      %p29 = scmp.ne.s32.totalorder %s20, %s21
      %p30 = scmp.eq.s32.totalorder %s15, 0
      %p31 = por %p29, %p30
      %p32 = scmp.ne.s32.totalorder %s20, %s21
      %p33 = scmp.eq.s32.totalorder %s16, 1
      %p34 = por %p32, %p33
      %p36 = scmp.ne.s32.totalorder %s21, %s35
      %p37 = scmp.eq.s32.totalorder %s16, 0
      %p38 = por %p36, %p37
      %s39 = ssub.s32 %s10, %s17
      %p40 = scmp.eq.s32.totalorder %s39, 0
      %s42 = sadd.s32 %s41, 1
      %s43 = scalar_select %p40, %s41, %s42
      %p46 = pneg %p40
      %p47 = scmp.eq.s32.totalorder %s10, 1
      %p48 = por %p46, %p47
      %p49 = scmp.ne.s32.totalorder %s41, %s44
      %p50 = scmp.eq.s32.totalorder %s10, 0
      %p51 = por %p49, %p50
      %p52 = scmp.ne.s32.totalorder %s41, %s44
      %p53 = scmp.eq.s32.totalorder %s15, 1
      %p54 = por %p52, %p53
      %p55 = scmp.ne.s32.totalorder %s44, %s45
      %p56 = scmp.eq.s32.totalorder %s15, 0
      %p57 = por %p55, %p56
      %p58 = scmp.ne.s32.totalorder %s44, %s45
      %p59 = scmp.eq.s32.totalorder %s16, 1
      %p60 = por %p58, %p59
      %p62 = scmp.ne.s32.totalorder %s45, %s61
      %p63 = scmp.eq.s32.totalorder %s16, 0
      %p64 = por %p62, %p63
      %s65 = ssub.s32 %s10, %s17
      %p66 = scmp.eq.s32.totalorder %s65, 0
      %s68 = sadd.s32 %s67, 1
      %s69 = scalar_select %p66, %s67, %s68
      %p72 = pneg %p66
      %p73 = scmp.eq.s32.totalorder %s10, 1
      %p74 = por %p72, %p73
      %p75 = scmp.ne.s32.totalorder %s67, %s70
      %p76 = scmp.eq.s32.totalorder %s10, 0
      %p77 = por %p75, %p76
      %p78 = scmp.ne.s32.totalorder %s67, %s70
      %p79 = scmp.eq.s32.totalorder %s15, 1
      %p80 = por %p78, %p79
      %p81 = scmp.ne.s32.totalorder %s70, %s71
      %p82 = scmp.eq.s32.totalorder %s15, 0
      %p83 = por %p81, %p82
      %p84 = scmp.ne.s32.totalorder %s70, %s71
      %p85 = scmp.eq.s32.totalorder %s16, 1
      %p86 = por %p84, %p85
      %p88 = scmp.ne.s32.totalorder %s71, %s87
      %p89 = scmp.eq.s32.totalorder %s16, 0
      %p90 = por %p88, %p89
      %s91 = ssub.s32 %s10, %s17
      %p92 = scmp.eq.s32.totalorder %s91, 0
      %s94 = sadd.s32 %s93, 1
      %s95 = scalar_select %p92, %s93, %s94
      %p98 = pneg %p92
      %p99 = scmp.eq.s32.totalorder %s10, 1
      %p100 = por %p98, %p99
      %p101 = scmp.ne.s32.totalorder %s93, %s96
      %p102 = scmp.eq.s32.totalorder %s10, 0
      %p103 = por %p101, %p102
      %p104 = scmp.ne.s32.totalorder %s93, %s96
      %p105 = scmp.eq.s32.totalorder %s15, 1
      %p106 = por %p104, %p105
      %p107 = scmp.ne.s32.totalorder %s96, %s97
      %p108 = scmp.eq.s32.totalorder %s15, 0
      %p109 = por %p107, %p108
      %p110 = scmp.ne.s32.totalorder %s96, %s97
      %p111 = scmp.eq.s32.totalorder %s16, 1
      %p112 = por %p110, %p111
      %p114 = scmp.ne.s32.totalorder %s97, %s113
      %p115 = scmp.eq.s32.totalorder %s16, 0
      %p116 = por %p114, %p115
      %p117 = scmp.le.s32.totalorder 1, %s10
      %p118 = scmp.lt.s32.totalorder %s10, 3
      %p119 = pnand %p117, %p118
      %p120 = pneg %p119
      // Predicated region
      $region9: #{quant_measure_forward.3} parent=5 // pred_check
        _
      $region10: #{quant_measure_forward.3} parent=5 // pred_check_branch
        %122 = sbr.rel (%p119) target = $region12
      $region11: #{quant_measure_forward.3} parent=5 // pred_region
        %s123 = ssub.s32 %s10, 1
        // Predicated region
        $region13: #{quant_measure_forward.3} parent=11 // pred_check
          %p124 = pneg %p31
        $region14: #{quant_measure_forward.3} parent=11 // pred_check_branch
          %126 = sbr.rel (%p124) target = $region16
        $region15: #{quant_measure_forward.3} parent=11 // pred_region
          %s128 = ssub.s32 16, 16
          %129 = vsyncadd [#allocation3], %s128
          %s131 = sshll.u32 %s0, 4
          %s132 = int_to_ptr.vmem [resolvable:$true] %s131
          %134 = dma.vmem_to_smem %s132, 16, [#allocation2], [#allocation3]
        $region16: #{quant_measure_forward.3} parent=11 // pred_fallthru
          _
      $region12: #{quant_measure_forward.3} parent=5 // pred_fallthru
        _
      %p135 = scmp.lt.s32.totalorder %s10, 2
      // Predicated region
      $region17: #{quant_measure_forward.3} parent=5 // pred_check
        %p136 = pneg %p135
      $region18: #{quant_measure_forward.3} parent=5 // pred_check_branch
        %138 = sbr.rel (%p136) target = $region20
      $region19: #{quant_measure_forward.3} parent=5 // pred_region
        // Predicated region
        $region21: #{quant_measure_forward.3} parent=19 // pred_check
          %p139 = pneg %p51
        $region22: #{quant_measure_forward.3} parent=19 // pred_check_branch
          %141 = sbr.rel (%p139) target = $region24
        $region23: #{quant_measure_forward.3} parent=19 // pred_region
          %p142 = scmp.lt.s32.totalorder %s10, 1
          %s143 = scalar_select %p142, %s10, 1
          %s144 = smul.addr %s143, 8
          %s145 = scalar_lea.vmem %s1, %s144
        $region24: #{quant_measure_forward.3} parent=19 // pred_fallthru
          _
        // Predicated region
        $region25: #{quant_measure_forward.3} parent=19 // pred_check
          %p146 = pneg %p77
        $region26: #{quant_measure_forward.3} parent=19 // pred_check_branch
          %148 = sbr.rel (%p146) target = $region28
        $region27: #{quant_measure_forward.3} parent=19 // pred_region
          %p149 = scmp.lt.s32.totalorder %s10, 1
          %s150 = scalar_select %p149, %s10, 1
          %s151 = smul.addr %s150, 8
          %s152 = scalar_lea.vmem %s2, %s151
        $region28: #{quant_measure_forward.3} parent=19 // pred_fallthru
          _
      $region20: #{quant_measure_forward.3} parent=5 // pred_fallthru
        _
      %p153 = scmp.le.s32.totalorder 1, %s10
      %p154 = scmp.lt.s32.totalorder %s10, 3
      %p155 = pnand %p153, %p154
      %p156 = pneg %p155
      // Predicated region
      $region29: #{quant_measure_forward.3} parent=5 // pred_check
        _
      $region30: #{quant_measure_forward.3} parent=5 // pred_check_branch
        %158 = sbr.rel (%p155) target = $region32
      $region31: #{quant_measure_forward.3} parent=5 // pred_region
        %s159 = ssub.s32 %s10, 1
        // Predicated region
        $region33: #{quant_measure_forward.3} parent=31 // pred_check
          %p160 = pneg %p31
        $region34: #{quant_measure_forward.3} parent=31 // pred_check_branch
          %162 = sbr.rel (%p160) target = $region36
        $region35: #{quant_measure_forward.3} parent=31 // pred_region
          %163 = dma.done [#allocation3], 16
        $region36: #{quant_measure_forward.3} parent=31 // pred_fallthru
          _
        %164 = sfence
        %p165 = pneg %p31
        %p166 = pneg %p28
        %p167 = scmp.lt.s32.totalorder %s15, 1
        %s168 = scalar_select %p167, %s15, 1
        %s169 = smul.addr %s168, 8
        %s170 = scalar_lea.vmem %s1, %s169
        %p171 = pneg %p57
        %p172 = pneg %p54
        %p173 = scmp.lt.s32.totalorder %s15, 1
        %s174 = scalar_select %p173, %s15, 1
        %s175 = smul.addr %s174, 8
        %s176 = scalar_lea.vmem %s2, %s175
        %p177 = pneg %p83
        %p178 = pneg %p80
        %p179 = pneg %p109
        %p180 = pneg %p106
        %p181 = scmp.lt.s32.totalorder %s15, 1
        %s182 = scalar_select %p181, %s15, 1
        %s183 = smul.addr %s182, 8
        %s184 = scalar_lea.vmem %s3, %s183
        %p185 = scmp.lt.s32.totalorder %s15, 1
        %s186 = scalar_select %p185, %s15, 1
        %s187 = smul.addr %s186, 8
        %s188 = scalar_lea.vmem %s1, %s187
        %p189 = scmp.lt.s32.totalorder %s15, 1
        %s190 = scalar_select %p189, %s15, 1
        %s191 = smul.addr %s190, 8
        %s192 = scalar_lea.vmem %s2, %s191
        %p193 = scmp.lt.s32.totalorder %s15, 1
        %s194 = scalar_select %p193, %s15, 1
        %s195 = smul.addr %s194, 8
        %s196 = scalar_lea.vmem %s3, %s195
        %s197 = sld [smem:[#allocation2 + $0x2]]
        %s198 = sld [smem:[#allocation2 + $0x3]]
        %v199 = vld [vmem:[%s188] sm:$0xff]
        %v200 = vstv %s197
        %v201 = vmul.f32 %v199, %v200
        %v202 = vstv %s198
        %v203 = vadd.f32 %v201, %v202
        %v204 = vld [vmem:[%s192] sm:$0xff]
        %v205 = vadd.f32 %v203, %v204
        %v206 = vmax.f32 %v205, 0.0
        %v207 = vmin.f32 %v206, 255.0
        %v208 = vround.ne.pseudo %v207
        %s209 = sld [smem:[#allocation2 + $0x1]]
        %v210 = vstv %s209
        %v211 = vmul.f32 %v208, %v210
        %s212 = sld [smem:[#allocation2]]
        %v213 = vstv %s212
        %v214 = vadd.f32 %v211, %v213
        %215 = vst [vmem:[%s196] sm:$0xff] %v214
        %p216 = scmp.lt.s32.totalorder %s15, 1
        %s217 = scalar_select %p216, %s15, 1
        %s218 = smul.addr %s217, 8
        %s219 = scalar_lea.vmem %s3, %s218
        // Predicated region
        $region37: #{quant_measure_forward.3} parent=31 // pred_check
          %p220 = pneg %p106
        $region38: #{quant_measure_forward.3} parent=31 // pred_check_branch
          %222 = sbr.rel (%p220) target = $region40
        $region39: #{quant_measure_forward.3} parent=31 // pred_region
          _
        $region40: #{quant_measure_forward.3} parent=31 // pred_fallthru
          _
      $region32: #{quant_measure_forward.3} parent=5 // pred_fallthru
        _
      %p223 = scmp.le.s32.totalorder 2, %s10
      // Predicated region
      $region41: #{quant_measure_forward.3} parent=5 // pred_check
        %p224 = pneg %p223
      $region42: #{quant_measure_forward.3} parent=5 // pred_check_branch
        %226 = sbr.rel (%p224) target = $region44
      $region43: #{quant_measure_forward.3} parent=5 // pred_region
        %s227 = ssub.s32 %s10, 2
        // Predicated region
        $region45: #{quant_measure_forward.3} parent=43 // pred_check
          %p228 = pneg %p112
        $region46: #{quant_measure_forward.3} parent=43 // pred_check_branch
          %230 = sbr.rel (%p228) target = $region48
        $region47: #{quant_measure_forward.3} parent=43 // pred_region
          %p231 = scmp.lt.s32.totalorder %s16, 1
          %s232 = scalar_select %p231, %s16, 1
          %s233 = smul.addr %s232, 8
          %s234 = scalar_lea.vmem %s3, %s233
        $region48: #{quant_measure_forward.3} parent=43 // pred_fallthru
          _
      $region44: #{quant_measure_forward.3} parent=5 // pred_fallthru
        _
    $region6: #{quant_measure_forward.3} parent=1 // loop_footer
      %s14 = sadd.s32 1, %s10
    $region7: #{quant_measure_forward.3} parent=1 // loop_footer_branch
      %9 = sbr.rel target = $region3
    $region8: #{quant_measure_forward.3} parent=1 // loop_exit
      _
    %235 = vsyncpa [#allocation3], 1
    %s236 = scalar_lea.sflag [#allocation3], 1
    %237 = vsyncpa %s236, 1

</llo_original>
